<compile_context>
chip_gen: v7x
topology: tpu7x:2x2x1
jax: 0.10.0
libtpu: 0.0.40
codegen_flags: <defaults>
</compile_context>

<pallas_src>
import functools

import jax
import jax.numpy as jnp
from jax.experimental import pallas as pl
from jax.experimental.pallas import tpu as pltpu


def _round_up(x, m):
    return (x + m - 1) // m * m


def _make_kernel(S, P, H, C, NF, offs):
    """Kernel closure for static feature sizes / slab row offsets."""
    SP = S + P
    KF = H + P
    o_w1, o_b1, o_w2, o_b2, o_wf, o_bf = offs

    def kernel(x_ref, p_ref, out_ref):
        x = x_ref[...]                                    # (TB, S+P) = [seg | num]

        # Static slices into the packed parameter slab (8-row aligned segments).
        w1a = p_ref[o_w1:o_w1 + SP, 0:H]                  # (S+P, H); numeric rows are 0
        b1 = p_ref[o_b1:o_b1 + 1, 0:H]
        w2 = p_ref[o_w2:o_w2 + H, 0:H]
        b2 = p_ref[o_b2:o_b2 + 1, 0:H]
        wf = p_ref[o_wf:o_wf + KF, 0:NF]                  # (H+P, NF) block-diag [wo | beta]
        bf = p_ref[o_bf:o_bf + 1, 0:NF]

        # MembershipModel trunk: Linear -> relu -> Linear -> relu
        # (w1 is augmented with zero rows for the numeric part of x, so no slicing).
        h1 = jnp.maximum(jnp.dot(x, w1a, preferred_element_type=jnp.float32) + b1, 0.0)
        h2 = jnp.maximum(jnp.dot(h1, w2, preferred_element_type=jnp.float32) + b2, 0.0)

        # One fused matmul produces [z (or z0-z1) | logits] for this tile.
        num = x[:, S:S + P]                               # (TB, P)
        hx = jnp.concatenate([h2, num], axis=1)           # (TB, H+P)
        zz = jnp.dot(hx, wf, preferred_element_type=jnp.float32) + bf     # (TB, NF)

        # Single XLU transpose puts the batch on the lane axis -> lane-dense tail.
        t = zz.T                                          # (NF, TB)

        if C == 2:
            # rows: 0 = z0 - z1, 1 = logit0, 2 = logit1 (remaining rows zero pad).
            # softmax over two classes == sigmoid(z0 - z1); sigmoid via EUP tanh.
            sig = 0.5 * (1.0 + jnp.tanh(0.5 * t))         # (NF, TB)
            lat0 = sig[0:1, :]
            s0 = sig[1:2, :]
            s1 = sig[2:3, :]
            final = s1 + lat0 * (s0 - s1)                 # lat0*s0 + (1-lat0)*s1
            final = jnp.clip(final, 1e-7, 1.0 - 1e-7)
            out_ref[...] = jnp.concatenate([final, lat0, 1.0 - lat0], axis=0)
        else:
            z_t = t[0:C, :]                               # (C, TB)
            lg_t = t[C:2 * C, :]                          # (C, TB)
            zm = z_t - jnp.max(z_t, axis=0, keepdims=True)
            ez = jnp.exp(zm)
            latent_t = ez / jnp.sum(ez, axis=0, keepdims=True)
            sig_t = 0.5 * (1.0 + jnp.tanh(0.5 * lg_t))
            final = jnp.sum(latent_t * sig_t, axis=0, keepdims=True)
            final = jnp.clip(final, 1e-7, 1.0 - 1e-7)
            out_ref[...] = jnp.concatenate([final, latent_t], axis=0)

    return kernel


def _pack_params(params, neg_beta):
    """Pack all parameters into one lane-padded f32 slab; return slab + static dims.

    Segments (all 8-row aligned, width padded to a multiple of 128):
      w1aug (S+P, H)  : [w1 ; 0]      -> first matmul runs directly on [seg|num]
      b1, w2, b2
      wf (H+P, nf)    : block-diagonal fused RHS producing [z or z0-z1 | logits]
      bf (1, nf)      : fused bias [bo or bo0-bo1 | beta intercept]
    """
    w1, b1, w2, b2, wo, bo, beta = [jnp.asarray(a, jnp.float32) for a in params]
    S, H = w1.shape
    C = wo.shape[1]

    if neg_beta:  # negBeta constraint: last two columns clamped non-positive
        beta = jnp.concatenate([beta[:, :-2], -jax.nn.relu(-beta[:, -2:])], axis=1)
    beta_icpt = jnp.reshape(beta[:, 0], (1, C))            # (1, C)
    beta_rest_t = beta[:, 1:].T                            # (P, C)
    P = beta_rest_t.shape[0]

    b1 = jnp.reshape(b1, (1, H))
    b2 = jnp.reshape(b2, (1, H))
    bo = jnp.reshape(bo, (1, C))

    w1aug = jnp.concatenate([w1, jnp.zeros((P, H), jnp.float32)], axis=0)   # (S+P, H)

    if C == 2:
        wf = jnp.zeros((H + P, 3), jnp.float32)
        wf = wf.at[0:H, 0].set(wo[:, 0] - wo[:, 1])                         # z0 - z1 weights
        wf = wf.at[H:H + P, 1:3].set(beta_rest_t)                           # logits weights
        bf = jnp.concatenate([bo[:, 0:1] - bo[:, 1:2], beta_icpt], axis=1)  # (1, 3)
        NF = 8                                                              # padded width
    else:
        wf = jnp.concatenate(
            [jnp.concatenate([wo, jnp.zeros((H, C), jnp.float32)], axis=1),
             jnp.concatenate([jnp.zeros((P, C), jnp.float32), beta_rest_t], axis=1)],
            axis=0)                                                         # (H+P, 2C)
        bf = jnp.concatenate([bo, beta_icpt], axis=1)                       # (1, 2C)
        NF = _round_up(2 * C, 8)

    pieces = [w1aug, b1, w2, b2, wf, bf]
    W = _round_up(max(H, NF), 128)                         # lane-padded slab width
    offs, padded, row = [], [], 0
    for a in pieces:
        r = _round_up(a.shape[0], 8)                       # 8-row aligned segments
        offs.append(row)
        padded.append(jnp.pad(a, ((0, r - a.shape[0]), (0, W - a.shape[1]))))
        row += r
    slab = jnp.concatenate(padded, axis=0)                 # (rows, W)
    return slab, tuple(offs), S, P, H, C, NF


@functools.partial(jax.jit, static_argnames=("neg_beta",))
def nnlccm_forward(segmentation_bases, numeric_attrs, params, neg_beta):
    """Pallas implementation of NNLCCM.forward.

    Returns (final_probabilities (B,), latent_classes (B, num_classes)).
    Note: if params are reused across many calls, _pack_params could be hoisted
    out and the slab passed in directly; kept inline here for a self-contained API.
    """
    seg = segmentation_bases.astype(jnp.float32)
    num = numeric_attrs.astype(jnp.float32)
    B = seg.shape[0]

    slab, offs, S, P, H, C, NF = _pack_params(params, neg_beta)
    R, W = slab.shape
    SP = S + P
    NOUT = C + 1

    x = jnp.concatenate([seg, num], axis=1)                # single (B, S+P) input stream

    # Batch tile: large (amortizes ~0.35 us/step), multiple of 128 when tiled,
    # >= 2 grid steps for big batches so v7x's two TensorCores both get work.
    # TB=4096 keeps double-buffered in+out tiles + f32 intermediates well under
    # even v7x's 32 MiB scoped-VMEM default.
    if B <= 1024:
        TB = _round_up(B, 8)                               # single tile, minimal padding
    else:
        TB = min(4096, _round_up(-(-B // 2), 128))
    B_pad = _round_up(B, TB)
    if B_pad != B:
        x = jnp.pad(x, ((0, B_pad - B), (0, 0)))

    kernel = _make_kernel(S, P, H, C, NF, offs)

    cost = pl.CostEstimate(
        flops=2 * B_pad * (SP * H + H * H + (H + P) * NF) + 16 * B_pad * NOUT,
        transcendentals=B_pad * (3 if C == 2 else 2 * C),
        bytes_accessed=4 * (B_pad * (SP + NOUT) + R * W),
    )

    out = pl.pallas_call(
        kernel,
        out_shape=jax.ShapeDtypeStruct((NOUT, B_pad), jnp.float32),
        grid=(B_pad // TB,),
        in_specs=[
            pl.BlockSpec((TB, SP), lambda i: (i, 0)),      # [seg|num] batch tile
            pl.BlockSpec((R, W), lambda i: (0, 0)),        # packed params: VMEM-resident
        ],
        out_specs=pl.BlockSpec((NOUT, TB), lambda i: (0, i)),  # lane-dense transposed output
        compiler_params=pltpu.CompilerParams(
            dimension_semantics=("parallel",)),            # 2x on v7x megacore
        cost_estimate=cost,
    )(x, slab)

    probs = out[0, :B]
    latent = out[1:1 + C, :B].T                            # tiny XLA transpose in the wrapper
    return probs, latent


def _reference_forward(segmentation_bases, numeric_attrs, params, neg_beta):
    """Pure-JAX reference matching the PyTorch semantics (for validation)."""
    w1, b1, w2, b2, wo, bo, beta = params
    h1 = jax.nn.relu(segmentation_bases @ w1 + b1)
    h2 = jax.nn.relu(h1 @ w2 + b2)
    latent = jax.nn.softmax(h2 @ wo + bo, axis=1)
    B = numeric_attrs.shape[0]
    x_aug = jnp.concatenate([jnp.ones((B, 1), jnp.float32), numeric_attrs], axis=1)
    if neg_beta:
        beta = jnp.concatenate([beta[:, :-2], -jax.nn.relu(-beta[:, -2:])], axis=1)
    logits = x_aug @ beta.T
    final = jnp.sum(latent * jax.nn.sigmoid(logits), axis=1)
    return jnp.clip(final, 1e-7, 1.0 - 1e-7), latent


if __name__ == "__main__":
    # Module hyperparameters (small, consistent with the forward pass)
    batch = 8
    segmentation_input_size = 16
    nnodes = 32
    num_classes = 2
    numeric_input_size = 8          # -> beta has numeric_input_size + 1 = 9 columns
    neg_beta = True

    key = jax.random.PRNGKey(0)
    ks = jax.random.split(key, 10)

    # Linear weights stored (in, out); bias as (1, out) for clean broadcast.
    w1 = jax.random.normal(ks[0], (segmentation_input_size, nnodes), jnp.float32) * 0.1
    b1 = jax.random.normal(ks[1], (1, nnodes), jnp.float32) * 0.1
    w2 = jax.random.normal(ks[2], (nnodes, nnodes), jnp.float32) * 0.1
    b2 = jax.random.normal(ks[3], (1, nnodes), jnp.float32) * 0.1
    wo = jax.random.normal(ks[4], (nnodes, num_classes), jnp.float32) * 0.1
    bo = jax.random.normal(ks[5], (1, num_classes), jnp.float32) * 0.1
    beta = jax.random.normal(ks[6], (num_classes, numeric_input_size + 1), jnp.float32)
    params = (w1, b1, w2, b2, wo, bo, beta)

    segmentation_bases = jax.random.normal(ks[7], (batch, segmentation_input_size), jnp.float32)
    numeric_attrs = jax.random.normal(ks[8], (batch, numeric_input_size), jnp.float32)

    probs, latent = nnlccm_forward(segmentation_bases, numeric_attrs, params,
                                   neg_beta=neg_beta)
    jax.block_until_ready((probs, latent))

    # Sanity check against pure-JAX reference
    probs_ref, latent_ref = _reference_forward(segmentation_bases, numeric_attrs, params, neg_beta)
    assert jnp.allclose(probs, probs_ref, atol=1e-5, rtol=1e-5)
    assert jnp.allclose(latent, latent_ref, atol=1e-5, rtol=1e-5)
    assert probs.shape == (batch,) and latent.shape == (batch, num_classes)

    print("KERNEL_OK")
</pallas_src>

<mosaic_0001>
module attributes {stable_mosaic.version = 11 : i64} {
  func.func @kernel(%arg0: i32, %arg1: memref<8x24xf32, #tpu.memory_space<vmem>>, %arg2: memref<120x128xf32, #tpu.memory_space<vmem>>, %arg3: memref<3x8xf32, #tpu.memory_space<vmem>>) attributes {dimension_semantics = [#tpu.dimension_semantics<parallel>], iteration_bounds = array<i64: 1>, scalar_prefetch = 0 : i64, scratch_operands = 0 : i64, tpu.core_type = #tpu.core_type<tc>, window_params = [{transform_indices = @transform_0, window_bounds = array<i64: 8, 24>}, {pipeline_mode = #tpu.pipeline_mode<synchronous>, transform_indices = @transform_1, window_bounds = array<i64: 120, 128>}, {transform_indices = @transform_2, window_bounds = array<i64: 3, 8>}]} {
    %c0 = arith.constant 0 : index
    %c0_0 = arith.constant 0 : index
    %0 = vector.load %arg1[%c0, %c0_0] : memref<8x24xf32, #tpu.memory_space<vmem>>, vector<8x24xf32>
    %c0_1 = arith.constant 0 : index
    %c0_2 = arith.constant 0 : index
    %1 = vector.load %arg2[%c0_1, %c0_2] : memref<120x128xf32, #tpu.memory_space<vmem>>, vector<24x32xf32>
    %c24 = arith.constant 24 : index
    %c0_3 = arith.constant 0 : index
    %2 = vector.load %arg2[%c24, %c0_3] : memref<120x128xf32, #tpu.memory_space<vmem>>, vector<1x32xf32>
    %c32 = arith.constant 32 : index
    %c0_4 = arith.constant 0 : index
    %3 = vector.load %arg2[%c32, %c0_4] : memref<120x128xf32, #tpu.memory_space<vmem>>, vector<32x32xf32>
    %c64 = arith.constant 64 : index
    %c0_5 = arith.constant 0 : index
    %4 = vector.load %arg2[%c64, %c0_5] : memref<120x128xf32, #tpu.memory_space<vmem>>, vector<1x32xf32>
    %c72 = arith.constant 72 : index
    %c0_6 = arith.constant 0 : index
    %5 = vector.load %arg2[%c72, %c0_6] : memref<120x128xf32, #tpu.memory_space<vmem>>, vector<40x8xf32>
    %c112 = arith.constant 112 : index
    %c0_7 = arith.constant 0 : index
    %6 = vector.load %arg2[%c112, %c0_7] : memref<120x128xf32, #tpu.memory_space<vmem>>, vector<1x8xf32>
    %cst = arith.constant dense<0.000000e+00> : vector<8x32xf32>
    %7 = tpu.matmul %0, %1, %cst {dimension_numbers = #tpu.dot_dimension_numbers<[1], [0], [0], [1], [0, 0, 1, 1], [], []>} : vector<8x24xf32>, vector<24x32xf32>, vector<8x32xf32> -> vector<8x32xf32>
    %8 = vector.broadcast %2 : vector<1x32xf32> to vector<8x32xf32>
    %9 = arith.addf %7, %8 : vector<8x32xf32>
    %cst_8 = arith.constant 0.000000e+00 : f32
    %10 = vector.broadcast %cst_8 : f32 to vector<8x32xf32>
    %11 = arith.maximumf %9, %10 : vector<8x32xf32>
    %cst_9 = arith.constant dense<0.000000e+00> : vector<8x32xf32>
    %12 = tpu.matmul %11, %3, %cst_9 {dimension_numbers = #tpu.dot_dimension_numbers<[1], [0], [0], [1], [0, 0, 1, 1], [], []>} : vector<8x32xf32>, vector<32x32xf32>, vector<8x32xf32> -> vector<8x32xf32>
    %13 = vector.broadcast %4 : vector<1x32xf32> to vector<8x32xf32>
    %14 = arith.addf %12, %13 : vector<8x32xf32>
    %cst_10 = arith.constant 0.000000e+00 : f32
    %15 = vector.broadcast %cst_10 : f32 to vector<8x32xf32>
    %16 = arith.maximumf %14, %15 : vector<8x32xf32>
    %17 = vector.extract_strided_slice %0 {offsets = [0, 16], sizes = [8, 8], strides = [1, 1]} : vector<8x24xf32> to vector<8x8xf32>
    %18 = tpu.concatenate %16, %17 in 1 : vector<8x32xf32>, vector<8x8xf32> -> vector<8x40xf32>
    %cst_11 = arith.constant dense<0.000000e+00> : vector<8x8xf32>
    %19 = tpu.matmul %18, %5, %cst_11 {dimension_numbers = #tpu.dot_dimension_numbers<[1], [0], [0], [1], [0, 0, 1, 1], [], []>} : vector<8x40xf32>, vector<40x8xf32>, vector<8x8xf32> -> vector<8x8xf32>
    %20 = vector.broadcast %6 : vector<1x8xf32> to vector<8x8xf32>
    %21 = arith.addf %19, %20 : vector<8x8xf32>
    %22 = tpu.transpose %21, [1, 0] : vector<8x8xf32> -> vector<8x8xf32>
    %cst_12 = arith.constant 5.000000e-01 : f32
    %23 = vector.broadcast %cst_12 : f32 to vector<8x8xf32>
    %24 = arith.mulf %23, %22 : vector<8x8xf32>
    %25 = math.tanh %24 : vector<8x8xf32>
    %cst_13 = arith.constant 1.000000e+00 : f32
    %26 = vector.broadcast %cst_13 : f32 to vector<8x8xf32>
    %27 = arith.addf %26, %25 : vector<8x8xf32>
    %cst_14 = arith.constant 5.000000e-01 : f32
    %28 = vector.broadcast %cst_14 : f32 to vector<8x8xf32>
    %29 = arith.mulf %28, %27 : vector<8x8xf32>
    %30 = vector.extract_strided_slice %29 {offsets = [0, 0], sizes = [1, 8], strides = [1, 1]} : vector<8x8xf32> to vector<1x8xf32>
    %31 = vector.extract_strided_slice %29 {offsets = [1, 0], sizes = [1, 8], strides = [1, 1]} : vector<8x8xf32> to vector<1x8xf32>
    %32 = vector.extract_strided_slice %29 {offsets = [2, 0], sizes = [1, 8], strides = [1, 1]} : vector<8x8xf32> to vector<1x8xf32>
    %33 = arith.subf %31, %32 : vector<1x8xf32>
    %34 = arith.mulf %30, %33 : vector<1x8xf32>
    %35 = arith.addf %32, %34 : vector<1x8xf32>
    %cst_15 = arith.constant 1.000000e-07 : f32
    %cst_16 = arith.constant 0.99999988 : f32
    %36 = vector.broadcast %cst_15 : f32 to vector<1x8xf32>
    %37 = arith.maximumf %36, %35 : vector<1x8xf32>
    %38 = vector.broadcast %cst_16 : f32 to vector<1x8xf32>
    %39 = arith.minimumf %38, %37 : vector<1x8xf32>
    %cst_17 = arith.constant 1.000000e+00 : f32
    %40 = vector.broadcast %cst_17 : f32 to vector<1x8xf32>
    %41 = arith.subf %40, %30 : vector<1x8xf32>
    %42 = tpu.concatenate %39, %30, %41 in 0 : vector<1x8xf32>, vector<1x8xf32>, vector<1x8xf32> -> vector<3x8xf32>
    %c0_18 = arith.constant 0 : index
    %c0_19 = arith.constant 0 : index
    %43 = vector.load %arg3[%c0_18, %c0_19] : memref<3x8xf32, #tpu.memory_space<vmem>>, vector<3x8xf32>
    tpu.vector_store %arg3[%c0_18, %c0_19], %42 {strides = array<i32>} : memref<3x8xf32, #tpu.memory_space<vmem>>, vector<3x8xf32>,
    return
  }
  func.func @transform_0(%arg0: i32) -> (i32, i32) {
    %c0_i32 = arith.constant 0 : i32
    %c0_i32_0 = arith.constant 0 : i32
    return %arg0, %c0_i32 : i32, i32
  }
  func.func @transform_1(%arg0: i32) -> (i32, i32) {
    %c0_i32 = arith.constant 0 : i32
    %c0_i32_0 = arith.constant 0 : i32
    %c0_i32_1 = arith.constant 0 : i32
    return %c0_i32, %c0_i32_0 : i32, i32
  }
  func.func @transform_2(%arg0: i32) -> (i32, i32) {
    %c0_i32 = arith.constant 0 : i32
    %c0_i32_0 = arith.constant 0 : i32
    return %c0_i32, %arg0 : i32, i32
  }
}

</mosaic_0001>

<llo_original>
// kernel: nnlccm_forward.1
$region0: #{nnlccm_forward.1}
  #allocation0 [shape = 'u32[]', space=smem, size = 0x4, offset = 0x4, fixed_abs, tag = 'smem constant byte address 0x4 - core index']
  #allocation1 [shape = 'u32[144,128]{1,0:T(1,128)}', space=vmem, size = 0x12000, scoped, tag = 'internal scratch']
  %s0 = inlined_call_operand.vmem [shape: f32[8,24], index: 0, kind: input, shape index: {}]
  %s1 = inlined_call_operand.vmem [shape: f32[120,128], index: 1, kind: input, shape index: {}]
  %s2 = inlined_call_operand.vmem [shape: f32[3,8], index: 2, kind: output, shape index: {}]
  %s3 = sld [smem:[#allocation0]]
  $region18: #{nnlccm_forward.1} parent=0
    _
  %s5 = ssub.s32 1, %s3
  %s6 = scalar_select 0, %s5, %s3
  // Predicated region
  $region2: #{nnlccm_forward.1} parent=0 // pred_check
    _
  $region3: #{nnlccm_forward.1} parent=0 // pred_check_branch
    %8 = sbr.rel (0) target = $region5
  $region4: #{nnlccm_forward.1} parent=0 // pred_region
    _
  $region5: #{nnlccm_forward.1} parent=0 // pred_fallthru
    _
  // Predicated region
  $region6: #{nnlccm_forward.1} parent=0 // pred_check
    _
  $region7: #{nnlccm_forward.1} parent=0 // pred_check_branch
    %10 = sbr.rel (0) target = $region9
  $region8: #{nnlccm_forward.1} parent=0 // pred_region
    _
  $region9: #{nnlccm_forward.1} parent=0 // pred_fallthru
    _
  %v11 = vld [vmem:[%s0] sm:$0xff]
  %v12 = vld [vmem:[%s1] sm:$0xff]
  %v13 = vld [vmem:[%s1 + $0x8] sm:$0xff]
  %v14 = vld [vmem:[%s1 + $0x10] sm:$0xff]
  %v15 = vld [vmem:[%s1 + $0x18] sm:$0x1]
  %v16 = vld [vmem:[%s1 + $0x20] sm:$0xff]
  %v17 = vld [vmem:[%s1 + $0x28] sm:$0xff]
  %v18 = vld [vmem:[%s1 + $0x30] sm:$0xff]
  %v19 = vld [vmem:[%s1 + $0x38] sm:$0xff]
  %v20 = vld [vmem:[%s1 + $0x40] sm:$0x1]
  %v21 = vld [vmem:[%s1 + $0x48] sm:$0xff]
  %v22 = vld [vmem:[%s1 + $0x50] sm:$0xff]
  %v23 = vld [vmem:[%s1 + $0x58] sm:$0xff]
  %v24 = vld [vmem:[%s1 + $0x60] sm:$0xff]
  %v25 = vld [vmem:[%s1 + $0x68] sm:$0xff]
  %v26 = vld [vmem:[%s1 + $0x70] sm:$0x1]
  %v27 = vlaneseq
  %v28 = vshrl.u32 %v27, 7
  %v29 = vsub.s32 0, %v28
  %v30 = vrot.slane %v15, %v29
  %vm31 = vcmask 195584
  %v33 = vsel %vm31, %v11, 0
  %35 = vmatprep.subr.mxu0 0.0
  %36 = vmatpush1.msra.mxu0 %v12
  %37 = vmatprep.subr.mxu0 0.0
  %38 = vmatpush1.msra.mxu0 %v13
  %39 = vmatprep.subr.mxu0 0.0
  %40 = vmatpush1.msra.mxu0 %v14
  %41 = vmatprep.subr.mxu0 0.0
  %42 = vmatpush1.msra.mxu0 0.0
  %43 = vmatprep.subr.mxu0 0.0
  %44 = vmatpush1.msra.mxu0 0.0
  %45 = vmatprep.subr.mxu0 0.0
  %46 = vmatpush1.msra.mxu0 0.0
  %47 = vmatprep.subr.mxu0 0.0
  %48 = vmatpush1.msra.mxu0 0.0
  %49 = vmatprep.subr.mxu0 0.0
  %50 = vmatpush1.msra.mxu0 0.0
  %51 = vmatprep.subr.mxu0 0.0
  %52 = vmatpush1.msra.mxu0 0.0
  %53 = vmatprep.subr.mxu0 0.0
  %54 = vmatpush1.msra.mxu0 0.0
  %55 = vmatprep.subr.mxu0 0.0
  %56 = vmatpush1.msra.mxu0 0.0
  %57 = vmatprep.subr.mxu0 0.0
  %58 = vmatpush1.msra.mxu0 0.0
  %59 = vmatprep.subr.mxu0 0.0
  %60 = vmatpush1.msra.mxu0 0.0
  %61 = vmatprep.subr.mxu0 0.0
  %62 = vmatpush1.msra.mxu0 0.0
  %63 = vmatprep.subr.mxu0 0.0
  %64 = vmatpush1.msra.mxu0 0.0
  %65 = vmatprep.subr.mxu0 0.0
  %66 = vmatpush1.msra.mxu0 0.0
  %67 = vmatprep.subr.mxu0 0.0
  %68 = vmatpush1.msra.mxu0 0.0
  %69 = vmatprep.subr.mxu0 0.0
  %70 = vmatpush1.msra.mxu0 0.0
  %71 = vmatprep.subr.mxu0 0.0
  %72 = vmatpush1.msra.mxu0 0.0
  %73 = vmatprep.subr.mxu0 0.0
  %74 = vmatpush1.msra.mxu0 0.0
  %75 = vmatprep.subr.mxu0 0.0
  %76 = vmatpush1.msra.mxu0 0.0
  %77 = vmatprep.subr.mxu0 0.0
  %78 = vmatpush1.msra.mxu0 0.0
  %79 = vmatprep.subr.mxu0 0.0
  %80 = vmatpush1.msra.mxu0 0.0
  %81 = vmatprep.subr.mxu0 0.0
  %82 = vmatpush1.msra.mxu0 0.0
  %83 = vmatprep.subr.mxu0 0.0
  %84 = vmatpush1.msra.mxu0 0.0
  %85 = vmatprep.subr.mxu0 0.0
  %86 = vmatpush1.msra.mxu0 0.0
  %87 = vmatprep.subr.mxu0 0.0
  %88 = vmatpush1.msra.mxu0 0.0
  %89 = vmatprep.subr.mxu0 0.0
  %90 = vmatpush1.msra.mxu0 0.0
  %91 = vmatprep.subr.mxu0 0.0
  %92 = vmatpush1.msra.mxu0 0.0
  %93 = vmatprep.subr.mxu0 0.0
  %94 = vmatpush1.msra.mxu0 0.0
  %95 = vmatprep.subr.mxu0 0.0
  %96 = vmatpush1.msra.mxu0 0.0
  %97 = vmatprep.subr.mxu0 0.0
  %98 = vmatpush1.msra.mxu0 0.0
  %99 = vmatprep.mubr.f32.mxu0 0.0
  %100 = vmatmul.mubr.f32.gmra.mrb[0].mxu0 %v33
  %v101 = vpop.f32.mrb[0].mxu0
  %v102 = vadd.f32 %v30, %v101
  %v103 = vpop.f32.mrb[0].mxu0
  %104 = vdwg.mxu0
  %v105 = vmax.f32 %v102, 0.0
  %v106 = vlaneseq
  %v107 = vshrl.u32 %v106, 7
  %v108 = vsub.s32 0, %v107
  %v109 = vrot.slane %v20, %v108
  %vm110 = vcmask 261120
  %v112 = vsel %vm110, %v105, 0
  %114 = vmatprep.subr.mxu0 0.0
  %115 = vmatpush1.msra.mxu0 %v16
  %116 = vmatprep.subr.mxu0 0.0
  %117 = vmatpush1.msra.mxu0 %v17
  %118 = vmatprep.subr.mxu0 0.0
  %119 = vmatpush1.msra.mxu0 %v18
  %120 = vmatprep.subr.mxu0 0.0
  %121 = vmatpush1.msra.mxu0 %v19
  %122 = vmatprep.subr.mxu0 0.0
  %123 = vmatpush1.msra.mxu0 0.0
  %124 = vmatprep.subr.mxu0 0.0
  %125 = vmatpush1.msra.mxu0 0.0
  %126 = vmatprep.subr.mxu0 0.0
  %127 = vmatpush1.msra.mxu0 0.0
  %128 = vmatprep.subr.mxu0 0.0
  %129 = vmatpush1.msra.mxu0 0.0
  %130 = vmatprep.subr.mxu0 0.0
  %131 = vmatpush1.msra.mxu0 0.0
  %132 = vmatprep.subr.mxu0 0.0
  %133 = vmatpush1.msra.mxu0 0.0
  %134 = vmatprep.subr.mxu0 0.0
  %135 = vmatpush1.msra.mxu0 0.0
  %136 = vmatprep.subr.mxu0 0.0
  %137 = vmatpush1.msra.mxu0 0.0
  %138 = vmatprep.subr.mxu0 0.0
  %139 = vmatpush1.msra.mxu0 0.0
  %140 = vmatprep.subr.mxu0 0.0
  %141 = vmatpush1.msra.mxu0 0.0
  %142 = vmatprep.subr.mxu0 0.0
  %143 = vmatpush1.msra.mxu0 0.0
  %144 = vmatprep.subr.mxu0 0.0
  %145 = vmatpush1.msra.mxu0 0.0
  %146 = vmatprep.subr.mxu0 0.0
  %147 = vmatpush1.msra.mxu0 0.0
  %148 = vmatprep.subr.mxu0 0.0
  %149 = vmatpush1.msra.mxu0 0.0
  %150 = vmatprep.subr.mxu0 0.0
  %151 = vmatpush1.msra.mxu0 0.0
  %152 = vmatprep.subr.mxu0 0.0
  %153 = vmatpush1.msra.mxu0 0.0
  %154 = vmatprep.subr.mxu0 0.0
  %155 = vmatpush1.msra.mxu0 0.0
  %156 = vmatprep.subr.mxu0 0.0
  %157 = vmatpush1.msra.mxu0 0.0
  %158 = vmatprep.subr.mxu0 0.0
  %159 = vmatpush1.msra.mxu0 0.0
  %160 = vmatprep.subr.mxu0 0.0
  %161 = vmatpush1.msra.mxu0 0.0
  %162 = vmatprep.subr.mxu0 0.0
  %163 = vmatpush1.msra.mxu0 0.0
  %164 = vmatprep.subr.mxu0 0.0
  %165 = vmatpush1.msra.mxu0 0.0
  %166 = vmatprep.subr.mxu0 0.0
  %167 = vmatpush1.msra.mxu0 0.0
  %168 = vmatprep.subr.mxu0 0.0
  %169 = vmatpush1.msra.mxu0 0.0
  %170 = vmatprep.subr.mxu0 0.0
  %171 = vmatpush1.msra.mxu0 0.0
  %172 = vmatprep.subr.mxu0 0.0
  %173 = vmatpush1.msra.mxu0 0.0
  %174 = vmatprep.subr.mxu0 0.0
  %175 = vmatpush1.msra.mxu0 0.0
  %176 = vmatprep.subr.mxu0 0.0
  %177 = vmatpush1.msra.mxu0 0.0
  %178 = vmatprep.mubr.f32.mxu0 0.0
  %179 = vmatmul.mubr.f32.gmra.mrb[0].mxu0 %v112
  %v180 = vpop.f32.mrb[0].mxu0
  %v181 = vadd.f32 %v109, %v180
  %v182 = vpop.f32.mrb[0].mxu0
  %183 = vdwg.mxu0
  %v184 = vmax.f32 %v181, 0.0
  %185 = vrot.lane.b32.xlu0 %v11, 16
  %v186 = vpop.permute.xlu0 %185
  %v188 = vsel %vm110, %v184, %v186
  %v189 = vlaneseq
  %v190 = vshrl.u32 %v189, 7
  %v191 = vsub.s32 0, %v190
  %v192 = vrot.slane %v26, %v191
  %vm193 = vcmask 326656
  %v195 = vsel %vm193, %v188, 0
  %197 = vmatprep.subr.mxu0 0.0
  %198 = vmatpush1.msra.mxu0 %v21
  %199 = vmatprep.subr.mxu0 0.0
  %200 = vmatpush1.msra.mxu0 %v22
  %201 = vmatprep.subr.mxu0 0.0
  %202 = vmatpush1.msra.mxu0 %v23
  %203 = vmatprep.subr.mxu0 0.0
  %204 = vmatpush1.msra.mxu0 %v24
  %205 = vmatprep.subr.mxu0 0.0
  %206 = vmatpush1.msra.mxu0 %v25
  %207 = vmatprep.subr.mxu0 0.0
  %208 = vmatpush1.msra.mxu0 0.0
  %209 = vmatprep.subr.mxu0 0.0
  %210 = vmatpush1.msra.mxu0 0.0
  %211 = vmatprep.subr.mxu0 0.0
  %212 = vmatpush1.msra.mxu0 0.0
  %213 = vmatprep.subr.mxu0 0.0
  %214 = vmatpush1.msra.mxu0 0.0
  %215 = vmatprep.subr.mxu0 0.0
  %216 = vmatpush1.msra.mxu0 0.0
  %217 = vmatprep.subr.mxu0 0.0
  %218 = vmatpush1.msra.mxu0 0.0
  %219 = vmatprep.subr.mxu0 0.0
  %220 = vmatpush1.msra.mxu0 0.0
  %221 = vmatprep.subr.mxu0 0.0
  %222 = vmatpush1.msra.mxu0 0.0
  %223 = vmatprep.subr.mxu0 0.0
  %224 = vmatpush1.msra.mxu0 0.0
  %225 = vmatprep.subr.mxu0 0.0
  %226 = vmatpush1.msra.mxu0 0.0
  %227 = vmatprep.subr.mxu0 0.0
  %228 = vmatpush1.msra.mxu0 0.0
  %229 = vmatprep.subr.mxu0 0.0
  %230 = vmatpush1.msra.mxu0 0.0
  %231 = vmatprep.subr.mxu0 0.0
  %232 = vmatpush1.msra.mxu0 0.0
  %233 = vmatprep.subr.mxu0 0.0
  %234 = vmatpush1.msra.mxu0 0.0
  %235 = vmatprep.subr.mxu0 0.0
  %236 = vmatpush1.msra.mxu0 0.0
  %237 = vmatprep.subr.mxu0 0.0
  %238 = vmatpush1.msra.mxu0 0.0
  %239 = vmatprep.subr.mxu0 0.0
  %240 = vmatpush1.msra.mxu0 0.0
  %241 = vmatprep.subr.mxu0 0.0
  %242 = vmatpush1.msra.mxu0 0.0
  %243 = vmatprep.subr.mxu0 0.0
  %244 = vmatpush1.msra.mxu0 0.0
  %245 = vmatprep.subr.mxu0 0.0
  %246 = vmatpush1.msra.mxu0 0.0
  %247 = vmatprep.subr.mxu0 0.0
  %248 = vmatpush1.msra.mxu0 0.0
  %249 = vmatprep.subr.mxu0 0.0
  %250 = vmatpush1.msra.mxu0 0.0
  %251 = vmatprep.subr.mxu0 0.0
  %252 = vmatpush1.msra.mxu0 0.0
  %253 = vmatprep.subr.mxu0 0.0
  %254 = vmatpush1.msra.mxu0 0.0
  %255 = vmatprep.subr.mxu0 0.0
  %256 = vmatpush1.msra.mxu0 0.0
  %257 = vmatprep.subr.mxu0 0.0
  %258 = vmatpush1.msra.mxu0 0.0
  %259 = vmatprep.subr.mxu0 0.0
  %260 = vmatpush1.msra.mxu0 0.0
  %261 = vmatprep.mubr.f32.mxu0 0.0
  %262 = vmatmul.mubr.f32.gmra.mrb[0].mxu0 %v195
  %v263 = vpop.f32.mrb[0].mxu0
  %v264 = vadd.f32 %v192, %v263
  %v265 = vpop.f32.mrb[0].mxu0
  %266 = vdwg.mxu0
  %267 = vxpose.xlu0.b32.start [1/16] %v264, 128
  %268 = vxpose.xlu0.b32.cont [2/16] 0.0, 128
  %269 = vxpose.xlu0.b32.cont [3/16] 0.0, 128
  %270 = vxpose.xlu0.b32.cont [4/16] 0.0, 128
  %271 = vxpose.xlu0.b32.cont [5/16] 0.0, 128
  %272 = vxpose.xlu0.b32.cont [6/16] 0.0, 128
  %273 = vxpose.xlu0.b32.cont [7/16] 0.0, 128
  %274 = vxpose.xlu0.b32.cont [8/16] 0.0, 128
  %275 = vxpose.xlu0.b32.cont [9/16] 0.0, 128
  %276 = vxpose.xlu0.b32.cont [10/16] 0.0, 128
  %277 = vxpose.xlu0.b32.cont [11/16] 0.0, 128
  %278 = vxpose.xlu0.b32.cont [12/16] 0.0, 128
  %279 = vxpose.xlu0.b32.cont [13/16] 0.0, 128
  %280 = vxpose.xlu0.b32.cont [14/16] 0.0, 128
  %281 = vxpose.xlu0.b32.cont [15/16] 0.0, 128
  %282 = vxpose.xlu0.b32.end [16/16] 0.0, 128
  %v283 = vpop.trf.xlu0
  %v284 = vpop.trf.xlu0
  %v285 = vpop.trf.xlu0
  %v286 = vpop.trf.xlu0
  %v287 = vpop.trf.xlu0
  %v288 = vpop.trf.xlu0
  %v289 = vpop.trf.xlu0
  %v290 = vpop.trf.xlu0
  %v291 = vpop.trf.xlu0
  %v292 = vpop.trf.xlu0
  %v293 = vpop.trf.xlu0
  %v294 = vpop.trf.xlu0
  %v295 = vpop.trf.xlu0
  %v296 = vpop.trf.xlu0
  %v297 = vpop.trf.xlu0
  %v298 = vpop.trf.xlu0
  %v299 = vmul.f32 %v283, 0.5
  %v300 = vtanh.pop %v299
  %v301 = vadd.f32 %v300, 1.0
  %v302 = vmul.f32 %v301, 0.5
  %v304 = vrot.slane %v302, 1
  %v306 = vsub.f32 %v302, %v304
  %v308 = vrot.slane %v306, 1
  %v310 = vmul.f32 %v302, %v308
  %v312 = vrot.slane %v310, 6
  %v314 = vadd.f32 %v302, %v312
  %v315 = vmax.f32 %v314, 1e-07
  %v316 = vmin.f32 %v315, 0.9999999
  %v317 = vsub.f32 1.0, %v302
  %v319 = vrot.slane %v316, 2
  %v321 = vrot.slane %v302, 7
  %v324 = vrot.slane %v317, 6
  %vm326 = vcmask 1040384
  %v327 = vsel %vm326, %v319, %v321
  %vm328 = vcmask 1041408
  %v329 = vsel %vm328, %v327, %v324
  %vm330 = vcmask 59392
  %331 = vst.msk [vmem:[%s2] sm:$0x7] %vm330, %v329
  // Predicated region
  $region10: #{nnlccm_forward.1} parent=0 // pred_check
    _
  $region11: #{nnlccm_forward.1} parent=0 // pred_check_branch
    %333 = sbr.rel (0) target = $region13
  $region12: #{nnlccm_forward.1} parent=0 // pred_region
    _
  $region13: #{nnlccm_forward.1} parent=0 // pred_fallthru
    _
  // Predicated region
  $region14: #{nnlccm_forward.1} parent=0 // pred_check
    _
  $region15: #{nnlccm_forward.1} parent=0 // pred_check_branch
    %335 = sbr.rel (0) target = $region17
  $region16: #{nnlccm_forward.1} parent=0 // pred_region
    _
  $region17: #{nnlccm_forward.1} parent=0 // pred_fallthru
    _

</llo_original>
